<compile_context>
chip_gen: v7x
topology: tpu7x:2x2x1
jax: 0.10.0
libtpu: 0.0.40
codegen_flags: <defaults>
</compile_context>

<pallas_src>
import functools

import jax
import jax.numpy as jnp
from jax.experimental import pallas as pl
from jax.experimental.pallas import tpu as pltpu

_BN_EPS = 1e-5
# (name, cin_pad, cout_pad): channel counts padded to sublane-friendly widths.
_LAYER_SPECS = (
    ("e_in", 8, 8), ("e_blk", 8, 8), ("e_out", 8, 8),
    ("c_in", 8, 16), ("c_blk1", 16, 16), ("c_blk2", 16, 16), ("c_out", 16, 8),
)
_K_MAX = 160   # im2col scratch rows: ones/header block + 9 taps * 16 channels


# ----------------------------------------------------------------------------
# Fused whole-network Pallas kernel
# ----------------------------------------------------------------------------
def _network_kernel(x_ref, mask_ref,
                    e_in_w, e_blk_w, e_out_w, c_in_w, c_blk1_w, c_blk2_w,
                    c_out_w, o_ref, t_ref, *, h, w, stage, roll_sign,
                    tap_dtype):
    hw = h * w

    # Static lane-roll amounts for the 9 taps (dy, dx) of the 3x3 stencil.
    shifts = []
    for ky in range(3):
        for kx in range(3):
            s = (ky - 1) * w + (kx - 1)            # flat offset of tap (ky,kx)
            shifts.append((-roll_sign * s) % hw)

    # im2col scratch init (once per program): row 0 = ones (bias row), rest 0.
    row_idx = jax.lax.broadcasted_iota(jnp.int32, t_ref.shape, 0)
    t_ref[...] = (row_idx == 0).astype(t_ref.dtype)

    def conv3x3(xact, w_ref, act):
        # xact: (cpad, hw) f32.  w_ref: (cout_pad, 10*cpad) bf16 with the bias
        # in column 0 and tap k / channel ci at column (k+1)*cpad + ci.
        cpad = xact.shape[0]                       # 8 or 16 (sublane aligned)
        k_total = w_ref.shape[1]                   # 80 or 160
        xs = xact.astype(tap_dtype)
        for k in range(9):
            rolled = xs if shifts[k] == 0 else pltpu.roll(
                xs, shift=shifts[k], axis=1)
            # center tap (k == 4) never crosses the image boundary -> no mask
            tap = rolled if k == 4 else rolled * mask_ref[k, :cpad, :]
            r0 = (k + 1) * cpad                    # 8/16-aligned block start
            t_ref[r0:r0 + cpad, :] = tap.astype(t_ref.dtype)
        y = jnp.dot(w_ref[...], t_ref[0:k_total, :],
                    preferred_element_type=jnp.float32)
        return jnp.maximum(y, 0.0) if act == "relu" else jax.nn.sigmoid(y)

    x = x_ref[0]                                   # (8, hw) f32, rows 3..7 = 0

    def calib_block(_, cfea):                      # shared-weight residual blk
        blk = conv3x3(cfea, c_blk1_w, "relu")
        blk = conv3x3(blk, c_blk2_w, "relu")
        return cfea + blk

    def stage_body(_, input_op):
        # ---- EnhanceNetwork(layers=1, channels=3) ----
        fea = conv3x3(input_op, e_in_w, "relu")
        fea = fea + conv3x3(fea, e_blk_w, "relu")
        fea = conv3x3(fea, e_out_w, "sigmoid")
        illu = jnp.clip(fea + input_op, 0.0001, 1.0)
        # ---- r = clamp(input / illu, 0, 1) ----
        r = jnp.clip(x * pl.reciprocal(illu, approx=True), 0.0, 1.0)
        # ---- CalibrateNetwork(layers=3, channels=16, shared blocks) ----
        cfea = conv3x3(r, c_in_w, "relu")
        cfea = jax.lax.fori_loop(0, 3, calib_block, cfea)
        cfea = conv3x3(cfea, c_out_w, "sigmoid")
        return x + (r - cfea)                      # input + att

    o_ref[0] = jax.lax.fori_loop(0, stage, stage_body, x)


# ----------------------------------------------------------------------------
# Wrapper: layout plumbing done once in XLA, then one pallas_call
# ----------------------------------------------------------------------------
def _tap_masks(h, w):
    """(9, h*w) f32 {0,1}: validity of each 3x3 tap at every output pixel."""
    pos = jnp.arange(h * w, dtype=jnp.int32)
    yy, xx = pos // w, pos % w
    rows = []
    for ky in range(3):
        for kx in range(3):
            dy, dx = ky - 1, kx - 1
            valid = ((yy + dy >= 0) & (yy + dy < h) &
                     (xx + dx >= 0) & (xx + dx < w))
            rows.append(valid.astype(jnp.float32))
    return jnp.stack(rows, axis=0)


def _fold_layer(wgt, scale, shift, cin_pad, cout_pad):
    """Fold BN scale + bias into one padded bf16 weight matrix.

    Column layout matches the in-kernel im2col scratch: column 0 multiplies
    the constant ones row (bias), column (k+1)*cin_pad + ci multiplies tap k
    of input channel ci; all padding rows/columns are zero.
    """
    cout, cin = wgt.shape[0], wgt.shape[1]
    wf = wgt * scale[:, None, None, None]                      # (Cout,Cin,3,3)
    wf = jnp.transpose(wf, (0, 2, 3, 1)).reshape(cout, 9, cin)  # k = ky*3+kx
    W = jnp.zeros((cout_pad, 10 * cin_pad), jnp.float32)
    W = W.at[:cout, 0].set(shift)
    for k in range(9):
        c0 = (k + 1) * cin_pad
        W = W.at[:cout, c0:c0 + cin].set(wf[:, k, :])
    return W.astype(jnp.bfloat16)


def _default_tap_dtype():
    """bf16 elementwise tap math on chips with bf16 VALUs (v6e+), else f32."""
    try:
        kind = jax.devices()[0].device_kind.lower()
    except Exception:
        return jnp.float32
    if any(tag in kind for tag in ("v6", "v7", "7x")):
        return jnp.bfloat16
    return jnp.float32


def network_forward(params, x, stage=3, roll_sign=1, tap_dtype=None):
    n, c, h, w = x.shape
    assert c == 3, "Network expects a 3-channel input"
    hw = h * w
    if tap_dtype is None:
        tap_dtype = _default_tap_dtype()

    # (N, 8, H*W): channels padded to a full sublane group, lane-dense images.
    x_pad = jnp.pad(x.reshape(n, c, hw).astype(jnp.float32),
                    ((0, 0), (0, 8 - c), (0, 0)))
    # Boundary masks, pre-broadcast to 16 channels (no in-kernel broadcasts).
    masks = jnp.broadcast_to(_tap_masks(h, w)[:, None, :],
                             (9, 16, hw)).astype(tap_dtype)

    weights = [_fold_layer(*params[name], cin_pad=cp, cout_pad=co)
               for name, cp, co in _LAYER_SPECS]

    vmem = pl.BlockSpec(memory_space=pltpu.MemorySpace.VMEM)
    out = pl.pallas_call(
        functools.partial(_network_kernel, h=h, w=w, stage=stage,
                          roll_sign=roll_sign, tap_dtype=tap_dtype),
        out_shape=jax.ShapeDtypeStruct((n, 8, hw), jnp.float32),
        grid=(n,),
        in_specs=[pl.BlockSpec((1, 8, hw), lambda b: (b, 0, 0)), vmem]
                 + [vmem] * len(weights),
        out_specs=pl.BlockSpec((1, 8, hw), lambda b: (b, 0, 0)),
        scratch_shapes=[pltpu.VMEM((_K_MAX, hw), jnp.bfloat16)],
        compiler_params=pltpu.CompilerParams(
            dimension_semantics=("parallel",)),
    )(x_pad, masks, *weights)
    return out[:, :c, :].reshape(n, c, h, w)


@functools.lru_cache(maxsize=None)
def _roll_convention():
    """Pin pltpu.roll's rotation direction once per process (tiny probe)."""
    def kern(x_ref, o_ref):
        o_ref[...] = pltpu.roll(x_ref[...], shift=1, axis=1)
    xp = jnp.arange(256, dtype=jnp.float32).reshape(2, 128)
    y = pl.pallas_call(
        kern, out_shape=jax.ShapeDtypeStruct((2, 128), jnp.float32))(xp)
    v = float(y[0, 1])
    if v == 0.0:
        return 1      # matches jnp.roll: out[i] = in[i - shift]
    if v == 2.0:
        return -1     # opposite direction
    raise RuntimeError(f"unexpected pltpu.roll behaviour: y[0,1]={v}")


# ----------------------------------------------------------------------------
# Deterministic parameter construction (shapes from the PyTorch __init__)
# ----------------------------------------------------------------------------
def _init_conv(key, cout, cin):
    kw, kb = jax.random.split(key)
    w = 0.02 * jax.random.normal(kw, (cout, cin, 3, 3), jnp.float32)
    b = 0.01 * jax.random.normal(kb, (cout,), jnp.float32)
    return w, b


def _init_bn(key, c):
    kg, kb, km, kv = jax.random.split(key, 4)
    gamma = 1.0 + 0.02 * jax.random.normal(kg, (c,), jnp.float32)
    beta = 0.02 * jax.random.normal(kb, (c,), jnp.float32)
    mean = 0.05 * jax.random.normal(km, (c,), jnp.float32)
    var = 1.0 + 0.1 * jax.random.uniform(kv, (c,), jnp.float32)
    return gamma, beta, mean, var


def _conv_bn_params(key, cout, cin):
    """Conv + BatchNorm (eval mode) as raw (w, scale, shift)."""
    kc, kn = jax.random.split(key)
    w, b = _init_conv(kc, cout, cin)
    gamma, beta, mean, var = _init_bn(kn, cout)
    g = gamma / jnp.sqrt(var + _BN_EPS)
    return (w, g, g * (b - mean) + beta)


def _conv_params(key, cout, cin):
    """Plain Conv as (w, scale=1, shift=bias)."""
    w, b = _init_conv(key, cout, cin)
    return (w, jnp.ones((cout,), jnp.float32), b)


def init_network_params(seed=0):
    keys = jax.random.split(jax.random.PRNGKey(seed), 8)
    ch_e, ch_c = 3, 16
    return {
        # EnhanceNetwork(layers=1, channels=3)
        "e_in": _conv_params(keys[0], ch_e, 3),          # Conv + ReLU
        "e_blk": _conv_bn_params(keys[1], ch_e, ch_e),   # Conv + BN + ReLU
        "e_out": _conv_params(keys[2], 3, ch_e),         # Conv + Sigmoid
        # CalibrateNetwork(layers=3, channels=16)
        "c_in": _conv_bn_params(keys[3], ch_c, 3),       # Conv + BN + ReLU
        "c_blk1": _conv_bn_params(keys[4], ch_c, ch_c),  # shared across blocks
        "c_blk2": _conv_bn_params(keys[5], ch_c, ch_c),
        "c_out": _conv_params(keys[6], 3, ch_c),         # Conv + Sigmoid
    }


# ----------------------------------------------------------------------------
# Pure-JAX f32 reference (independent path: lax.conv) for validation
# ----------------------------------------------------------------------------
def _conv3x3_ref(x, wgt, scale, shift, act):
    y = jax.lax.conv_general_dilated(
        x, wgt, window_strides=(1, 1), padding=((1, 1), (1, 1)),
        dimension_numbers=("NCHW", "OIHW", "NCHW"))
    y = y * scale[None, :, None, None] + shift[None, :, None, None]
    return jnp.maximum(y, 0.0) if act == "relu" else jax.nn.sigmoid(y)


def network_forward_ref(params, x, stage=3):
    input_op = x
    for _ in range(stage):
        fea = _conv3x3_ref(input_op, *params["e_in"], act="relu")
        fea = fea + _conv3x3_ref(fea, *params["e_blk"], act="relu")
        fea = _conv3x3_ref(fea, *params["e_out"], act="sigmoid")
        illu = jnp.clip(fea + input_op, 0.0001, 1.0)
        r = jnp.clip(x / illu, 0.0, 1.0)
        cfea = _conv3x3_ref(r, *params["c_in"], act="relu")
        for _ in range(3):
            blk = _conv3x3_ref(cfea, *params["c_blk1"], act="relu")
            blk = _conv3x3_ref(blk, *params["c_blk2"], act="relu")
            cfea = cfea + blk
        cfea = _conv3x3_ref(cfea, *params["c_out"], act="sigmoid")
        input_op = x + (r - cfea)
    return input_op


if __name__ == "__main__":
    key = jax.random.PRNGKey(0)
    k_x, _ = jax.random.split(key)
    # Network expects a 3-channel image: (N, C, H, W) = (2, 3, 16, 16) in [0,1]
    x = jax.random.uniform(k_x, (2, 3, 16, 16), jnp.float32, 0.05, 1.0)
    params = init_network_params(seed=0)

    roll_sign = _roll_convention()        # one-off cached probe (correctness)
    tap_dtype = _default_tap_dtype()      # bf16 elementwise on v6e/v7x
    fwd = jax.jit(functools.partial(network_forward, stage=3,
                                    roll_sign=roll_sign, tap_dtype=tap_dtype))
    out = jax.block_until_ready(fwd(params, x))
    assert out.shape == (2, 3, 16, 16) and out.dtype == jnp.float32
    assert bool(jnp.all(jnp.isfinite(out)))

    # Validate the fused bf16-operand kernel against a pure-JAX f32 reference.
    ref = network_forward_ref(params, x, stage=3)
    err = float(jnp.max(jnp.abs(out - ref)))
    assert err < 4e-2, f"kernel deviates from reference: max|diff|={err}"
    print("KERNEL_OK")
</pallas_src>

<mosaic_0001>
module attributes {stable_mosaic.version = 11 : i64} {
  func.func @kern(%arg0: memref<2x128xf32, #tpu.memory_space<vmem>>, %arg1: memref<2x128xf32, #tpu.memory_space<vmem>>) attributes {dimension_semantics = [], scalar_prefetch = 0 : i64, scratch_operands = 0 : i64, tpu.core_type = #tpu.core_type<tc>} {
    %c0 = arith.constant 0 : index
    %c0_0 = arith.constant 0 : index
    %0 = vector.load %arg0[%c0, %c0_0] : memref<2x128xf32, #tpu.memory_space<vmem>>, vector<2x128xf32>
    %c1_i32 = arith.constant 1 : i32
    %1 = tpu.dynamic_rotate %0 by %c1_i32 dim 1 : vector<2x128xf32>, i32 -> vector<2x128xf32>
    %c0_1 = arith.constant 0 : index
    %c0_2 = arith.constant 0 : index
    %2 = vector.load %arg1[%c0_1, %c0_2] : memref<2x128xf32, #tpu.memory_space<vmem>>, vector<2x128xf32>
    tpu.vector_store %arg1[%c0_1, %c0_2], %1 {strides = array<i32>} : memref<2x128xf32, #tpu.memory_space<vmem>>, vector<2x128xf32>,
    return
  }
}

</mosaic_0001>

<llo_original>
// kernel: tpu_custom_call.1
$region0: #{tpu_custom_call.1}
  #allocation0 [shape = 'u32[]', space=smem, size = 0x4, offset = 0x4, fixed_abs, tag = 'smem constant byte address 0x4 - core index']
  #allocation1 [shape = 'u32[144,128]{1,0:T(1,128)}', space=vmem, size = 0x12000, scoped, tag = 'internal scratch']
  %s0 = inlined_call_operand.hbm [shape: f32[2,128], index: 0, kind: input, shape index: {}]
  %s1 = inlined_call_operand.hbm [shape: f32[2,128], index: 1, kind: output, shape index: {}]
  %s2 = sld [smem:[#allocation0]]
  $region18: #{tpu_custom_call.1} parent=0
    _
  %s4 = ssub.s32 1, %s2
  %s5 = scalar_select 0, %s4, %s2
  $region1: #{tpu_custom_call.1} parent=0
    #allocation2 [shape = 'u8[1024]{0}', space=vmem, size = 0x400, scoped, tag = 'input window, operand 0, single buffered']
    #allocation3 [shape = 's32[1]{0}', space=sflag, size = 0x4, scoped, tag = 'scoped memory for tpu_custom_call.1']
    #allocation4 [shape = 's32[1]{0}', space=sflag, size = 0x4, scoped, tag = 'scoped memory for tpu_custom_call.1']
    #allocation5 [shape = 'u8[1024]{0}', space=vmem, size = 0x400, scoped, tag = 'output window, operand 0, single buffered']
    %6 = vsyncpa [#allocation3], 0
    %7 = vsyncpa [#allocation4], 0
    // Predicated region
    $region2: #{tpu_custom_call.1} parent=1 // pred_check
      _
    $region3: #{tpu_custom_call.1} parent=1 // pred_check_branch
      %9 = sbr.rel (0) target = $region5
    $region4: #{tpu_custom_call.1} parent=1 // pred_region
      %s11 = ssub.s32 32, 32
      %12 = vsyncadd [#allocation3], %s11
      %s14 = sshll.u32 [#allocation2], 4
      %s15 = int_to_ptr.vmem [resolvable:$true] %s14
      %17 = dma.hbm_to_vmem [thread:$0]  %s0, 32, %s15, [#allocation3]
    $region5: #{tpu_custom_call.1} parent=1 // pred_fallthru
      _
    // Predicated region
    $region6: #{tpu_custom_call.1} parent=1 // pred_check
      _
    $region7: #{tpu_custom_call.1} parent=1 // pred_check_branch
      %19 = sbr.rel (0) target = $region9
    $region8: #{tpu_custom_call.1} parent=1 // pred_region
      %20 = dma.done [#allocation3], 32
    $region9: #{tpu_custom_call.1} parent=1 // pred_fallthru
      _
    %v21 = vld [vmem:[#allocation2] sm:$0x3]
    %22 = vrot.lane.b32.xlu0 %v21, 1
    %v23 = vpop.permute.xlu0 %22
    %24 = vst [vmem:[#allocation5] sm:$0x3] %v23
    // Predicated region
    $region10: #{tpu_custom_call.1} parent=1 // pred_check
      _
    $region11: #{tpu_custom_call.1} parent=1 // pred_check_branch
      %26 = sbr.rel (0) target = $region13
    $region12: #{tpu_custom_call.1} parent=1 // pred_region
      %s28 = ssub.s32 32, 32
      %29 = vsyncadd [#allocation4], %s28
      %s31 = sshll.u32 [#allocation5], 4
      %s32 = int_to_ptr.vmem [resolvable:$true] %s31
      %34 = dma.vmem_to_hbm [thread:$0]  %s32, 32, %s1, [#allocation4]
    $region13: #{tpu_custom_call.1} parent=1 // pred_fallthru
      _
    // Predicated region
    $region14: #{tpu_custom_call.1} parent=1 // pred_check
      _
    $region15: #{tpu_custom_call.1} parent=1 // pred_check_branch
      %36 = sbr.rel (0) target = $region17
    $region16: #{tpu_custom_call.1} parent=1 // pred_region
      %37 = dma.done [#allocation4], 32
    $region17: #{tpu_custom_call.1} parent=1 // pred_fallthru
      _
    %38 = vsyncpa [#allocation3], 1
    %39 = vsyncpa [#allocation4], 1

</llo_original>
